<compile_context>
chip_gen: v6e
topology: v6e:2x2x1
jax: 0.10.0
libtpu: 0.0.40
codegen_flags: <defaults>
</compile_context>

<pallas_src>
import functools

import jax
import jax.numpy as jnp
from jax.experimental import pallas as pl
from jax.experimental.pallas import tpu as pltpu


_LANE = 128
_TARGET_BLOCK_BYTES = 6 * 1024 * 1024    # ~6 MiB per buffer
_VMEM_LIMIT_BYTES = 48 * 1024 * 1024     # explicit: fits v7x (64 MiB physical)


def _sublane_multiple(dtype) -> int:
    """Rows-per-vreg for the dtype (f32:8, bf16/f16:16, int8/fp8:32)."""
    itemsize = jnp.dtype(dtype).itemsize
    if itemsize >= 4:
        return 8
    if itemsize == 2:
        return 16
    return 32


def _scale_kernel(x_ref, o_ref, *, size, scale, compute_dtype):
    # Elementwise hot path. Integer inputs are promoted here (fused with the
    # load) instead of in a standalone XLA convert before the kernel.
    x = x_ref[...]
    if x.dtype != compute_dtype:
        x = x.astype(compute_dtype)
    # Same op order as torch: divide by size, then multiply by scale.
    o_ref[...] = ((x / size) * scale).astype(o_ref.dtype)


def linear_embedding(x: jax.Array, size: int, scale: float = 1.0,
                     *, min_pallas_elements: int = 1 << 18) -> jax.Array:
    """Pallas equivalent of LinearEmbedding.forward.

    Returns (x / size * scale) with a trailing singleton axis appended
    (same semantics as torch unsqueeze(-1)).
    """
    orig_shape = x.shape
    n = x.size

    # torch true-division promotes integer inputs to float; mirror that.
    # (float64 / int64 under jax_enable_x64 is not specially handled.)
    if jnp.issubdtype(x.dtype, jnp.floating):
        out_dtype = x.dtype
    else:
        out_dtype = jnp.float32

    if n == 0 or n < min_pallas_elements:
        # Tiny input: fixed pallas_call launch + DMA setup dominates; let XLA
        # fuse the scalar math into neighboring ops instead.
        xb = x if x.dtype == out_dtype else x.astype(out_dtype)
        return ((xb / size) * scale)[..., None]

    in_dtype = x.dtype
    in_item = jnp.dtype(in_dtype).itemsize
    out_item = jnp.dtype(out_dtype).itemsize
    # Sublane alignment must satisfy both input and output dtypes.
    sub = max(_sublane_multiple(in_dtype), _sublane_multiple(out_dtype))

    # Lane-dense slab: widest cols in {1024,512,256,128} that divides n, so no
    # pad and no [:n] slice are needed (each would be a full-array HBM round
    # trip outside the custom call).
    cols = None
    for c in (8 * _LANE, 4 * _LANE, 2 * _LANE, _LANE):
        if n % c == 0:
            cols = c
            break

    xf = x.reshape(-1)
    if cols is None:
        # Rare fallback: n not a multiple of 128 -> zero-pad to full rows.
        cols = 8 * _LANE
        rows = pl.cdiv(n, cols)
        xf = jnp.pad(xf, (0, rows * cols - n))
        padded = True
    else:
        rows = n // cols
        padded = False
    x2 = xf.reshape(rows, cols)

    # Block rows: ~_TARGET_BLOCK_BYTES per buffer (sized by the wider of the
    # in/out dtypes), sublane aligned, and capped so inputs spanning more than
    # one vreg-row group always get >= 2 grid steps (keeps both v7x
    # TensorCores fed via the "parallel" grid axis).
    item = max(in_item, out_item)
    if rows <= sub:
        block_rows = rows                       # full-dim escape of (8,128) rule
    else:
        block_rows = max(sub, (_TARGET_BLOCK_BYTES // (cols * item)) // sub * sub)
        two_step_cap = pl.cdiv(pl.cdiv(rows, 2), sub) * sub
        block_rows = max(sub, min(block_rows, two_step_cap))

    grid = (pl.cdiv(rows, block_rows),)         # ragged last block is masked

    out2 = pl.pallas_call(
        functools.partial(_scale_kernel, size=size, scale=scale,
                          compute_dtype=out_dtype),
        out_shape=jax.ShapeDtypeStruct((rows, cols), out_dtype),
        grid_spec=pltpu.PrefetchScalarGridSpec(
            num_scalar_prefetch=0,
            grid=grid,
            in_specs=[pl.BlockSpec((block_rows, cols), lambda i: (i, 0))],
            out_specs=pl.BlockSpec((block_rows, cols), lambda i: (i, 0)),
        ),
        compiler_params=pltpu.CompilerParams(
            dimension_semantics=("parallel",),
            vmem_limit_bytes=_VMEM_LIMIT_BYTES),
        cost_estimate=pl.CostEstimate(
            flops=2 * rows * cols,
            transcendentals=0,
            bytes_accessed=rows * cols * (in_item + out_item)),
    )(x2)

    out_flat = out2.reshape(-1)
    if padded:
        out_flat = out_flat[:n]
    # unsqueeze(-1): pure reshape glue.
    return out_flat.reshape(orig_shape + (1,))


def _reference(x, size, scale):
    if not jnp.issubdtype(x.dtype, jnp.floating):
        x = x.astype(jnp.float32)
    return (x / size * scale)[..., None]


if __name__ == "__main__":
    key = jax.random.PRNGKey(0)
    k1, k2, k3, k4, k5, k6 = jax.random.split(key, 6)
    size, scale = 32, 1.0

    def check(x, min_elems, expect_shape):
        out = jax.block_until_ready(
            linear_embedding(x, size=size, scale=scale,
                             min_pallas_elements=min_elems))
        ref = _reference(x, size, scale)
        assert out.shape == ref.shape == expect_shape, (out.shape, expect_shape)
        assert out.dtype == ref.dtype, (out.dtype, ref.dtype)
        assert jnp.allclose(out, ref, atol=1e-6, rtol=1e-6)

    # 1) Baseline shape, forced through the Pallas kernel (single block,
    #    full-dim escape).
    x1 = jax.random.uniform(k1, (2, 4, 16, 16), jnp.float32, 0.0, 32.0)
    check(x1, 0, (2, 4, 16, 16, 1))

    # 2) Multiple grid steps (block-row cap -> 2 "parallel" steps).
    x2 = jax.random.uniform(k2, (8, 64, 128), jnp.float32, 0.0, 32.0)
    check(x2, 0, (8, 64, 128, 1))

    # 3) Ragged last block along the row axis (15 rows, 8-row blocks).
    x3 = jax.random.uniform(k3, (3, 40, 128), jnp.float32, 0.0, 32.0)
    check(x3, 0, (3, 40, 128, 1))

    # 4) Integer input: promotion to float32 happens inside the kernel.
    x4 = jax.random.randint(k4, (4, 32, 32), 0, 64, dtype=jnp.int32)
    check(x4, 0, (4, 32, 32, 1))

    # 5) n not a multiple of 128: rare zero-pad fallback path.
    x5 = jax.random.uniform(k5, (5, 200), jnp.float32, 0.0, 32.0)
    check(x5, 0, (5, 200, 1))

    # 6) Tiny input on the default path: bypasses Pallas, XLA fuses the math.
    x6 = jax.random.uniform(k6, (2, 4, 16), jnp.float32, 0.0, 32.0)
    check(x6, 1 << 18, (2, 4, 16, 1))

    print("KERNEL_OK")
</pallas_src>

<mosaic_0001>
module attributes {stable_mosaic.version = 11 : i64} {
  func.func @_scale_kernel(%arg0: i32, %arg1: memref<2x1024xf32, #tpu.memory_space<vmem>>, %arg2: memref<2x1024xf32, #tpu.memory_space<vmem>>) attributes {dimension_semantics = [#tpu.dimension_semantics<parallel>], iteration_bounds = array<i64: 1>, scalar_prefetch = 0 : i64, scratch_operands = 0 : i64, tpu.core_type = #tpu.core_type<tc>, window_params = [{transform_indices = @transform_0, window_bounds = array<i64: 2, 1024>}, {transform_indices = @transform_1, window_bounds = array<i64: 2, 1024>}]} {
    %c0 = arith.constant 0 : index
    %c0_0 = arith.constant 0 : index
    %0 = vector.load %arg1[%c0, %c0_0] : memref<2x1024xf32, #tpu.memory_space<vmem>>, vector<2x1024xf32>
    %cst = arith.constant 3.200000e+01 : f32
    %1 = vector.broadcast %cst : f32 to vector<2x1024xf32>
    %2 = arith.divf %0, %1 : vector<2x1024xf32>
    %cst_1 = arith.constant 1.000000e+00 : f32
    %3 = vector.broadcast %cst_1 : f32 to vector<2x1024xf32>
    %4 = arith.mulf %2, %3 : vector<2x1024xf32>
    %c0_2 = arith.constant 0 : index
    %c0_3 = arith.constant 0 : index
    %5 = vector.load %arg2[%c0_2, %c0_3] : memref<2x1024xf32, #tpu.memory_space<vmem>>, vector<2x1024xf32>
    tpu.vector_store %arg2[%c0_2, %c0_3], %4 {strides = array<i32>} : memref<2x1024xf32, #tpu.memory_space<vmem>>, vector<2x1024xf32>,
    return
  }
  func.func @transform_0(%arg0: i32) -> (i32, i32) {
    %c0_i32 = arith.constant 0 : i32
    %c0_i32_0 = arith.constant 0 : i32
    return %arg0, %c0_i32 : i32, i32
  }
  func.func @transform_1(%arg0: i32) -> (i32, i32) {
    %c0_i32 = arith.constant 0 : i32
    %c0_i32_0 = arith.constant 0 : i32
    return %arg0, %c0_i32 : i32, i32
  }
}

</mosaic_0001>

<llo_original>
// kernel: tpu_custom_call.1
$region0: #{tpu_custom_call.1}
  #allocation0 [shape = 'u32[]', space=smem, size = 0x4, offset = 0x4, fixed_abs, tag = 'smem constant byte address 0x4 - core index']
  #allocation1 [shape = 'u32[144,128]{1,0:T(1,128)}', space=vmem, size = 0x12000, scoped, tag = 'internal scratch']
  %s0 = inlined_call_operand.hbm [shape: f32[2,1024], index: 0, kind: input, shape index: {}]
  %s1 = inlined_call_operand.hbm [shape: f32[2,1024], index: 1, kind: output, shape index: {}]
  %s2 = sld [smem:[#allocation0]]
  $region18: #{tpu_custom_call.1} parent=0
    _
  %s4 = ssub.s32 1, %s2
  %s5 = scalar_select 0, %s4, %s2
  $region1: #{tpu_custom_call.1} parent=0
    #allocation2 [shape = 'u8[8192]{0}', space=vmem, size = 0x2000, scoped, tag = 'input window, operand 0, single buffered']
    #allocation3 [shape = 's32[1]{0}', space=sflag, size = 0x4, scoped, tag = 'scoped memory for tpu_custom_call.1']
    #allocation4 [shape = 's32[1]{0}', space=sflag, size = 0x4, scoped, tag = 'scoped memory for tpu_custom_call.1']
    #allocation5 [shape = 'u8[8192]{0}', space=vmem, size = 0x2000, scoped, tag = 'output window, operand 0, single buffered']
    %6 = vsyncpa [#allocation3], 0
    %7 = vsyncpa [#allocation4], 0
    // Predicated region
    $region2: #{tpu_custom_call.1} parent=1 // pred_check
      _
    $region3: #{tpu_custom_call.1} parent=1 // pred_check_branch
      %9 = sbr.rel (0) target = $region5
    $region4: #{tpu_custom_call.1} parent=1 // pred_region
      %s11 = ssub.s32 256, 256
      %12 = vsyncadd [#allocation3], %s11
      %s14 = sshll.u32 [#allocation2], 4
      %s15 = int_to_ptr.vmem [resolvable:$true] %s14
      %17 = dma.hbm_to_vmem [thread:$0]  %s0, 256, %s15, [#allocation3]
    $region5: #{tpu_custom_call.1} parent=1 // pred_fallthru
      _
    // Predicated region
    $region6: #{tpu_custom_call.1} parent=1 // pred_check
      _
    $region7: #{tpu_custom_call.1} parent=1 // pred_check_branch
      %19 = sbr.rel (0) target = $region9
    $region8: #{tpu_custom_call.1} parent=1 // pred_region
      %20 = dma.done [#allocation3], 256
    $region9: #{tpu_custom_call.1} parent=1 // pred_fallthru
      _
    %v21 = vld [vmem:[#allocation2] sm:$0xff]
    %v22 = vld [vmem:[#allocation2 + $0x8] sm:$0xff]
    %v23 = vrcp.pop 32.0
    %v24 = vmul.f32 %v21, %v23
    %v25 = vmul.f32 %v22, %v23
    %26 = vst [vmem:[#allocation5] sm:$0xff] %v24
    %27 = vst [vmem:[#allocation5 + $0x8] sm:$0xff] %v25
    // Predicated region
    $region10: #{tpu_custom_call.1} parent=1 // pred_check
      _
    $region11: #{tpu_custom_call.1} parent=1 // pred_check_branch
      %29 = sbr.rel (0) target = $region13
    $region12: #{tpu_custom_call.1} parent=1 // pred_region
      %s31 = ssub.s32 256, 256
      %32 = vsyncadd [#allocation4], %s31
      %s34 = sshll.u32 [#allocation5], 4
      %s35 = int_to_ptr.vmem [resolvable:$true] %s34
      %37 = dma.vmem_to_hbm [thread:$0]  %s35, 256, %s1, [#allocation4]
    $region13: #{tpu_custom_call.1} parent=1 // pred_fallthru
      _
    // Predicated region
    $region14: #{tpu_custom_call.1} parent=1 // pred_check
      _
    $region15: #{tpu_custom_call.1} parent=1 // pred_check_branch
      %39 = sbr.rel (0) target = $region17
    $region16: #{tpu_custom_call.1} parent=1 // pred_region
      %40 = dma.done [#allocation4], 256
    $region17: #{tpu_custom_call.1} parent=1 // pred_fallthru
      _
    %41 = vsyncpa [#allocation3], 1
    %42 = vsyncpa [#allocation4], 1

</llo_original>
